<compile_context>
chip_gen: v5e
topology: v5e:2x2
jax: 0.10.0
libtpu: 0.0.40
codegen_flags: <defaults>
</compile_context>

<pallas_src>
import numpy as np
import jax
import jax.numpy as jnp
from jax import lax
from jax.experimental import pallas as pl
from jax.experimental.pallas import tpu as pltpu

INF = 10000000000000.0  # same constant as the PyTorch module


# ---------------------------------------------------------------------------
# Pallas kernel: per (batch, row-tile) produce the (heads, TL, Lp) logit slab.
# ---------------------------------------------------------------------------
def _egp_kernel(qr_ref, krT_ref, be_ref, bo_ref, amc_ref, amr_ref, o_ref):
    heads, TL, Lp = o_ref.shape[1], o_ref.shape[2], o_ref.shape[3]
    row0 = pl.program_id(1) * TL

    # Fused score matmul on the MXU: (TL, D) x (D, Lp).  K is pre-transposed
    # in HBM so the RHS is already in canonical (K, N) layout.
    qk = jnp.dot(qr_ref[0], krT_ref[0], preferred_element_type=jnp.float32)

    # tril + attention-mask offset: (TL,1) vs (1,Lp) broadcasted compare (no
    # full-size iota intermediates), folded into one select.
    rows = lax.broadcasted_iota(jnp.int32, (TL, 1), 0) + row0
    cols = lax.broadcasted_iota(jnp.int32, (1, Lp), 1)
    attn_off = (1.0 - amc_ref[0] * amr_ref[0]) * jnp.float32(INF)     # (TL, Lp)
    off = jnp.where(rows > cols, attn_off + jnp.float32(INF), attn_off)
    base = qk - off                       # hoisted out of the per-head loop

    be = be_ref[0]                        # (heads, Lp)  column bias (even ch.)
    bo = bo_ref[0]                        # (TL, heads)  row bias    (odd ch.)
    for h in range(heads):                # static unroll over heads
        o_ref[0, h] = (base + be[h:h + 1, :] + bo[:, h:h + 1]).astype(o_ref.dtype)


# ---------------------------------------------------------------------------
# Precompute (hoisted to plain XLA): dense1 + RoPE + dense2 bias split.
# ---------------------------------------------------------------------------
def _make_rope_tables(seqlen, head_size):
    inv_freq = 1.0 / (10000.0 ** (np.arange(0, head_size, 2, dtype=np.float32)
                                  / head_size))
    t = np.arange(seqlen, dtype=np.float32)
    freqs = np.einsum('n,d->nd', t, inv_freq)                  # (seqlen, D/2)
    return jnp.asarray(np.cos(freqs)), jnp.asarray(np.sin(freqs))


def _precompute(x, W1, b1, W2, b2, heads, head_size, Lp):
    """Returns qr (B,Lp,D) pre-scaled by 1/sqrt(D), krT (B,D,Lp),
    be (B,heads,Lp) column bias (even dense2 channels), bo (B,Lp,heads) row
    bias (odd channels).  q/k are kept de-interleaved ([t1 | t2] layout); the
    q.k dot product is invariant to that shared permutation."""
    B, L, H = x.shape
    D = head_size
    if Lp != L:
        x = jnp.pad(x, ((0, 0), (0, Lp - L), (0, 0)))
    h1 = jnp.einsum('blh,ch->blc', x.astype(jnp.float32), W1) + b1   # (B,Lp,2D)
    qw, kw = h1[..., 0::2], h1[..., 1::2]
    cos, sin = _make_rope_tables(Lp, D)                              # (Lp, D/2)

    def rope(t):
        t1, t2 = t[..., 0::2], t[..., 1::2]
        return jnp.concatenate([t1 * cos - t2 * sin, t1 * sin + t2 * cos], axis=-1)

    qr = rope(qw) * jnp.float32(1.0 / np.sqrt(D))                    # (B,Lp,D)
    krT = jnp.swapaxes(rope(kw), 1, 2)                               # (B,D,Lp)
    bias = (jnp.einsum('blc,dc->bld', h1, W2) + b2) * 0.5            # (B,Lp,2*heads)
    be = jnp.swapaxes(bias[..., 0::2], 1, 2)                         # (B,heads,Lp)
    bo = bias[..., 1::2]                                             # (B,Lp,heads)
    return qr, krT, be, bo


# ---------------------------------------------------------------------------
# Generation-aware tile / VMEM-limit selection.
# ---------------------------------------------------------------------------
def _vmem_capacity_bytes():
    try:
        return int(pltpu.get_tpu_info().vmem_capacity_bytes)
    except Exception:
        return 64 << 20          # conservative fallback: v7x per-TC VMEM


def _pick_row_tile_and_vmem(Lp, D, heads, out_itemsize, tile_rows=None):
    """v5e/v6e (128 MiB VMEM): ~88 MiB working-set budget, 96 MiB scoped cap;
       v7x (64 MiB per TC):    ~40 MiB budget, 48 MiB scoped cap."""
    cap = _vmem_capacity_bytes()
    hard_cap = max(32 << 20, min(int(cap * 0.75), cap - (16 << 20)))
    budget = hard_cap - (8 << 20)
    f32 = 4

    def estimate(tl):
        out_blk = 2 * heads * tl * Lp * out_itemsize            # dbl-buffered output
        in_blk = 2 * f32 * (tl * max(D, 128)                    # qr tile (lane pad)
                            + max(D, 8) * Lp                    # krT
                            + max(heads, 8) * Lp                # be
                            + 2 * tl * 128                      # bo + row mask
                            + 8 * Lp)                           # col mask
        interm = 5 * tl * Lp * f32                              # qk / off / base / temps
        return out_blk + in_blk + interm

    if tile_rows is not None:
        tl = int(tile_rows)
    else:
        cands = [t for t in range(8, Lp + 1, 8) if Lp % t == 0] or [Lp]
        tl = cands[0]
        for c in sorted(cands, reverse=True):
            if estimate(c) <= budget:
                tl = c
                break
    # Scoped limit recomputed from the ACTUAL tile (incl. user tile_rows).
    vmem_limit = int(min(hard_cap, max(estimate(tl) + (8 << 20), 32 << 20)))
    return tl, vmem_limit


# ---------------------------------------------------------------------------
# Public wrapper.
# ---------------------------------------------------------------------------
def efficient_global_pointer(x, attention_mask, W1, b1, W2, b2, heads, head_size,
                             tile_rows=None, out_dtype=jnp.bfloat16,
                             pad_to_lanes=True):
    """JAX/Pallas forward of EfficientGlobalPointer (RoPE=True, tril_mask=True).

    x: (B, L, H); W1: (2*head_size, H); b1: (2*head_size,);
    W2: (2*heads, 2*head_size); b2: (2*heads,).  Returns (B, heads, L, L).

    out_dtype defaults to bfloat16 (the kernel is HBM-writeback bound; halving
    output bytes ~halves wall clock).  Pass jnp.float32 for f32 parity.
    """
    B, L, H = x.shape
    D = head_size

    # Lane-dense output stores: pad seq to a multiple of 128, slice afterwards.
    Lp = ((L + 127) // 128) * 128 if pad_to_lanes else L

    qr, krT, be, bo = _precompute(x, jnp.asarray(W1, jnp.float32),
                                  jnp.asarray(b1, jnp.float32),
                                  jnp.asarray(W2, jnp.float32),
                                  jnp.asarray(b2, jnp.float32),
                                  heads, D, Lp)

    if attention_mask is None:
        am = jnp.ones((B, L), jnp.float32)
    else:
        am = attention_mask.astype(jnp.float32)
    if Lp != L:
        am = jnp.pad(am, ((0, 0), (0, Lp - L)))         # padded positions fully masked
    am_col = am.reshape(B, Lp, 1)
    am_row = am.reshape(B, 1, Lp)

    TL, vmem_limit = _pick_row_tile_and_vmem(Lp, D, heads,
                                             np.dtype(out_dtype).itemsize,
                                             tile_rows)
    assert Lp % TL == 0 and (TL == Lp or TL % 8 == 0), \
        "row tile must divide the (padded) seq length and be a multiple of 8"
    R = Lp // TL

    out = pl.pallas_call(
        _egp_kernel,
        out_shape=jax.ShapeDtypeStruct((B, heads, Lp, Lp), out_dtype),
        grid=(B, R),
        in_specs=[
            pl.BlockSpec((1, TL, D), lambda b, r: (b, r, 0)),        # qr (row tile)
            pl.BlockSpec((1, D, Lp), lambda b, r: (b, 0, 0)),        # krT (per batch)
            pl.BlockSpec((1, heads, Lp), lambda b, r: (b, 0, 0)),    # column bias
            pl.BlockSpec((1, TL, heads), lambda b, r: (b, r, 0)),    # row bias (tile)
            pl.BlockSpec((1, TL, 1), lambda b, r: (b, r, 0)),        # mask, row part
            pl.BlockSpec((1, 1, Lp), lambda b, r: (b, 0, 0)),        # mask, col part
        ],
        out_specs=pl.BlockSpec((1, heads, TL, Lp), lambda b, r: (b, 0, r, 0)),
        compiler_params=pltpu.CompilerParams(
            # No cross-iteration state (precompute was hoisted), so both grid
            # axes are "parallel" -> megacore/v7x splits freely, even for B=1.
            dimension_semantics=("parallel", "parallel"),
            vmem_limit_bytes=vmem_limit),
    )(qr, krT, be, bo, am_col, am_row)

    if Lp != L:
        out = out[:, :, :L, :L]
    return out


# ---------------------------------------------------------------------------
# Pure-JAX transcription of the PyTorch forward (for validation).
# ---------------------------------------------------------------------------
def reference_forward(x, attention_mask, W1, b1, W2, b2, heads, head_size,
                      tril_mask=True):
    B, L, H = x.shape
    cos, sin = _make_rope_tables(L, head_size)
    h1 = jnp.einsum('blh,ch->blc', x, W1) + b1
    qw, kw = h1[..., 0::2], h1[..., 1::2]

    def rope(t):
        t1, t2 = t[..., 0::2], t[..., 1::2]
        r = jnp.stack([t1 * cos - t2 * sin, t1 * sin + t2 * cos], axis=-1)
        return r.reshape(r.shape[:-2] + (-1,))

    qw, kw = rope(qw), rope(kw)
    logits = jnp.einsum('bmd,bnd->bmn', qw, kw) / head_size ** 0.5
    bias = jnp.swapaxes(jnp.einsum('blc,dc->bld', h1, W2) + b2, 1, 2) / 2
    logits = logits[:, None] + bias[:, 0::2, None] + bias[:, 1::2, :, None]
    if attention_mask is not None:
        attn = 1 - attention_mask[:, None, None, :] * attention_mask[:, None, :, None]
        logits = logits - attn * INF
    if tril_mask:
        m = jnp.tril(jnp.ones((L, L), jnp.float32), -1)
        logits = logits - m * INF
    return logits


if __name__ == "__main__":
    B, L, H = 2, 16, 32
    heads, head_size = 4, 16

    key = jax.random.PRNGKey(0)
    k1, k2, k3, k4, k5 = jax.random.split(key, 5)
    x = jax.random.normal(k1, (B, L, H), jnp.float32)
    W1 = 0.1 * jax.random.normal(k2, (2 * head_size, H), jnp.float32)
    b1 = 0.1 * jax.random.normal(k3, (2 * head_size,), jnp.float32)
    W2 = 0.1 * jax.random.normal(k4, (2 * heads, 2 * head_size), jnp.float32)
    b2 = 0.1 * jax.random.normal(k5, (2 * heads,), jnp.float32)
    # non-trivial attention mask (pads out the tail of batch 1)
    am = jnp.ones((B, L), jnp.float32).at[1, 12:].set(0.0)

    ref = np.asarray(reference_forward(x, am, W1, b1, W2, b2, heads, head_size))

    # f32 path with explicit row tile (exercises tile_rows -> vmem_limit recompute)
    out_f32 = jax.block_until_ready(
        efficient_global_pointer(x, am, W1, b1, W2, b2, heads, head_size,
                                 tile_rows=64, out_dtype=jnp.float32))
    # default path: bf16 output, auto-picked row tile
    out_bf16 = jax.block_until_ready(
        efficient_global_pointer(x, am, W1, b1, W2, b2, heads, head_size))

    assert out_f32.shape == (B, heads, L, L)
    assert out_bf16.shape == (B, heads, L, L)

    if not np.allclose(np.asarray(out_f32), ref, rtol=1e-3, atol=1e-2):
        raise AssertionError("f32 Pallas kernel output does not match reference")
    if not np.allclose(np.asarray(out_bf16.astype(jnp.float32)), ref,
                       rtol=5e-2, atol=0.5):
        raise AssertionError("bf16 Pallas kernel output does not match reference")

    print("KERNEL_OK")
</pallas_src>

<mosaic_0001>
module attributes {stable_mosaic.version = 11 : i64} {
  func.func @_egp_kernel(%arg0: i32, %arg1: i32, %arg2: memref<1x64x16xf32, #tpu.memory_space<vmem>>, %arg3: memref<1x16x128xf32, #tpu.memory_space<vmem>>, %arg4: memref<1x4x128xf32, #tpu.memory_space<vmem>>, %arg5: memref<1x64x4xf32, #tpu.memory_space<vmem>>, %arg6: memref<1x64x1xf32, #tpu.memory_space<vmem>>, %arg7: memref<1x1x128xf32, #tpu.memory_space<vmem>>, %arg8: memref<1x4x64x128xf32, #tpu.memory_space<vmem>>) attributes {dimension_semantics = [#tpu.dimension_semantics<parallel>, #tpu.dimension_semantics<parallel>], iteration_bounds = array<i64: 2, 2>, scalar_prefetch = 0 : i64, scratch_operands = 0 : i64, tpu.core_type = #tpu.core_type<tc>, window_params = [{transform_indices = @transform_0, window_bounds = array<i64: 1, 64, 16>}, {transform_indices = @transform_1, window_bounds = array<i64: 1, 16, 128>}, {transform_indices = @transform_2, window_bounds = array<i64: 1, 4, 128>}, {transform_indices = @transform_3, window_bounds = array<i64: 1, 64, 4>}, {transform_indices = @transform_4, window_bounds = array<i64: 1, 64, 1>}, {transform_indices = @transform_5, window_bounds = array<i64: 1, 1, 128>}, {transform_indices = @transform_6, window_bounds = array<i64: 1, 4, 64, 128>}]} {
    %c64_i32 = arith.constant 64 : i32
    %0 = arith.muli %arg1, %c64_i32 : i32
    %c0 = arith.constant 0 : index
    %c0_0 = arith.constant 0 : index
    %c0_1 = arith.constant 0 : index
    %1 = vector.load %arg2[%c0, %c0_0, %c0_1] : memref<1x64x16xf32, #tpu.memory_space<vmem>>, vector<1x64x16xf32>
    %2 = vector.shape_cast %1 : vector<1x64x16xf32> to vector<64x16xf32>
    %c0_2 = arith.constant 0 : index
    %c0_3 = arith.constant 0 : index
    %c0_4 = arith.constant 0 : index
    %3 = vector.load %arg3[%c0_2, %c0_3, %c0_4] : memref<1x16x128xf32, #tpu.memory_space<vmem>>, vector<1x16x128xf32>
    %4 = vector.shape_cast %3 : vector<1x16x128xf32> to vector<16x128xf32>
    %cst = arith.constant dense<0.000000e+00> : vector<64x128xf32>
    %5 = tpu.matmul %2, %4, %cst {dimension_numbers = #tpu.dot_dimension_numbers<[1], [0], [0], [1], [0, 0, 1, 1], [], []>} : vector<64x16xf32>, vector<16x128xf32>, vector<64x128xf32> -> vector<64x128xf32>
    %6 = tpu.iota {dimensions = array<i32: 0>} : vector<64x1xi32>
    %7 = vector.broadcast %0 : i32 to vector<64x1xi32>
    %8 = arith.addi %6, %7 : vector<64x1xi32>
    %9 = tpu.iota {dimensions = array<i32: 1>} : vector<1x128xi32>
    %c0_5 = arith.constant 0 : index
    %c0_6 = arith.constant 0 : index
    %c0_7 = arith.constant 0 : index
    %10 = vector.load %arg6[%c0_5, %c0_6, %c0_7] : memref<1x64x1xf32, #tpu.memory_space<vmem>>, vector<1x64x1xf32>
    %11 = vector.shape_cast %10 : vector<1x64x1xf32> to vector<64x1xf32>
    %c0_8 = arith.constant 0 : index
    %c0_9 = arith.constant 0 : index
    %c0_10 = arith.constant 0 : index
    %12 = vector.load %arg7[%c0_8, %c0_9, %c0_10] : memref<1x1x128xf32, #tpu.memory_space<vmem>>, vector<1x1x128xf32>
    %13 = vector.shape_cast %12 : vector<1x1x128xf32> to vector<1x128xf32>
    %14 = vector.broadcast %11 : vector<64x1xf32> to vector<64x128xf32>
    %15 = vector.broadcast %13 : vector<1x128xf32> to vector<64x128xf32>
    %16 = arith.mulf %14, %15 : vector<64x128xf32>
    %cst_11 = arith.constant 1.000000e+00 : f32
    %17 = vector.broadcast %cst_11 : f32 to vector<64x128xf32>
    %18 = arith.subf %17, %16 : vector<64x128xf32>
    %cst_12 = arith.constant 9.99999982E+12 : f32
    %19 = vector.broadcast %cst_12 : f32 to vector<64x128xf32>
    %20 = arith.mulf %18, %19 : vector<64x128xf32>
    %21 = vector.broadcast %8 : vector<64x1xi32> to vector<64x128xi32>
    %22 = vector.broadcast %9 : vector<1x128xi32> to vector<64x128xi32>
    %23 = arith.cmpi sgt, %21, %22 : vector<64x128xi32>
    %cst_13 = arith.constant 9.99999982E+12 : f32
    %24 = vector.broadcast %cst_13 : f32 to vector<64x128xf32>
    %25 = arith.addf %20, %24 : vector<64x128xf32>
    %26 = arith.select %23, %25, %20 : vector<64x128xi1>, vector<64x128xf32>
    %27 = arith.subf %5, %26 : vector<64x128xf32>
    %c0_14 = arith.constant 0 : index
    %c0_15 = arith.constant 0 : index
    %c0_16 = arith.constant 0 : index
    %28 = vector.load %arg4[%c0_14, %c0_15, %c0_16] : memref<1x4x128xf32, #tpu.memory_space<vmem>>, vector<1x4x128xf32>
    %29 = vector.shape_cast %28 : vector<1x4x128xf32> to vector<4x128xf32>
    %c0_17 = arith.constant 0 : index
    %c0_18 = arith.constant 0 : index
    %c0_19 = arith.constant 0 : index
    %30 = vector.load %arg5[%c0_17, %c0_18, %c0_19] : memref<1x64x4xf32, #tpu.memory_space<vmem>>, vector<1x64x4xf32>
    %31 = vector.shape_cast %30 : vector<1x64x4xf32> to vector<64x4xf32>
    %32 = vector.extract_strided_slice %29 {offsets = [0, 0], sizes = [1, 128], strides = [1, 1]} : vector<4x128xf32> to vector<1x128xf32>
    %33 = vector.broadcast %32 : vector<1x128xf32> to vector<64x128xf32>
    %34 = arith.addf %27, %33 : vector<64x128xf32>
    %35 = vector.extract_strided_slice %31 {offsets = [0, 0], sizes = [64, 1], strides = [1, 1]} : vector<64x4xf32> to vector<64x1xf32>
    %36 = vector.broadcast %35 : vector<64x1xf32> to vector<64x128xf32>
    %37 = arith.addf %34, %36 : vector<64x128xf32>
    %c0_20 = arith.constant 0 : index
    %c0_21 = arith.constant 0 : index
    %c0_22 = arith.constant 0 : index
    %c0_23 = arith.constant 0 : index
    %38 = vector.load %arg8[%c0_20, %c0_21, %c0_22, %c0_23] : memref<1x4x64x128xf32, #tpu.memory_space<vmem>>, vector<1x1x64x128xf32>
    %39 = vector.shape_cast %38 : vector<1x1x64x128xf32> to vector<64x128xf32>
    %40 = vector.shape_cast %37 : vector<64x128xf32> to vector<1x1x64x128xf32>
    tpu.vector_store %arg8[%c0_20, %c0_21, %c0_22, %c0_23], %40 {strides = array<i32>} : memref<1x4x64x128xf32, #tpu.memory_space<vmem>>, vector<1x1x64x128xf32>,
    %41 = vector.extract_strided_slice %29 {offsets = [1, 0], sizes = [1, 128], strides = [1, 1]} : vector<4x128xf32> to vector<1x128xf32>
    %42 = vector.broadcast %41 : vector<1x128xf32> to vector<64x128xf32>
    %43 = arith.addf %27, %42 : vector<64x128xf32>
    %44 = vector.extract_strided_slice %31 {offsets = [0, 1], sizes = [64, 1], strides = [1, 1]} : vector<64x4xf32> to vector<64x1xf32>
    %45 = vector.broadcast %44 : vector<64x1xf32> to vector<64x128xf32>
    %46 = arith.addf %43, %45 : vector<64x128xf32>
    %c0_24 = arith.constant 0 : index
    %c1 = arith.constant 1 : index
    %c0_25 = arith.constant 0 : index
    %c0_26 = arith.constant 0 : index
    %47 = vector.load %arg8[%c0_24, %c1, %c0_25, %c0_26] : memref<1x4x64x128xf32, #tpu.memory_space<vmem>>, vector<1x1x64x128xf32>
    %48 = vector.shape_cast %47 : vector<1x1x64x128xf32> to vector<64x128xf32>
    %49 = vector.shape_cast %46 : vector<64x128xf32> to vector<1x1x64x128xf32>
    tpu.vector_store %arg8[%c0_24, %c1, %c0_25, %c0_26], %49 {strides = array<i32>} : memref<1x4x64x128xf32, #tpu.memory_space<vmem>>, vector<1x1x64x128xf32>,
    %50 = vector.extract_strided_slice %29 {offsets = [2, 0], sizes = [1, 128], strides = [1, 1]} : vector<4x128xf32> to vector<1x128xf32>
    %51 = vector.broadcast %50 : vector<1x128xf32> to vector<64x128xf32>
    %52 = arith.addf %27, %51 : vector<64x128xf32>
    %53 = vector.extract_strided_slice %31 {offsets = [0, 2], sizes = [64, 1], strides = [1, 1]} : vector<64x4xf32> to vector<64x1xf32>
    %54 = vector.broadcast %53 : vector<64x1xf32> to vector<64x128xf32>
    %55 = arith.addf %52, %54 : vector<64x128xf32>
    %c0_27 = arith.constant 0 : index
    %c2 = arith.constant 2 : index
    %c0_28 = arith.constant 0 : index
    %c0_29 = arith.constant 0 : index
    %56 = vector.load %arg8[%c0_27, %c2, %c0_28, %c0_29] : memref<1x4x64x128xf32, #tpu.memory_space<vmem>>, vector<1x1x64x128xf32>
    %57 = vector.shape_cast %56 : vector<1x1x64x128xf32> to vector<64x128xf32>
    %58 = vector.shape_cast %55 : vector<64x128xf32> to vector<1x1x64x128xf32>
    tpu.vector_store %arg8[%c0_27, %c2, %c0_28, %c0_29], %58 {strides = array<i32>} : memref<1x4x64x128xf32, #tpu.memory_space<vmem>>, vector<1x1x64x128xf32>,
    %59 = vector.extract_strided_slice %29 {offsets = [3, 0], sizes = [1, 128], strides = [1, 1]} : vector<4x128xf32> to vector<1x128xf32>
    %60 = vector.broadcast %59 : vector<1x128xf32> to vector<64x128xf32>
    %61 = arith.addf %27, %60 : vector<64x128xf32>
    %62 = vector.extract_strided_slice %31 {offsets = [0, 3], sizes = [64, 1], strides = [1, 1]} : vector<64x4xf32> to vector<64x1xf32>
    %63 = vector.broadcast %62 : vector<64x1xf32> to vector<64x128xf32>
    %64 = arith.addf %61, %63 : vector<64x128xf32>
    %c0_30 = arith.constant 0 : index
    %c3 = arith.constant 3 : index
    %c0_31 = arith.constant 0 : index
    %c0_32 = arith.constant 0 : index
    %65 = vector.load %arg8[%c0_30, %c3, %c0_31, %c0_32] : memref<1x4x64x128xf32, #tpu.memory_space<vmem>>, vector<1x1x64x128xf32>
    %66 = vector.shape_cast %65 : vector<1x1x64x128xf32> to vector<64x128xf32>
    %67 = vector.shape_cast %64 : vector<64x128xf32> to vector<1x1x64x128xf32>
    tpu.vector_store %arg8[%c0_30, %c3, %c0_31, %c0_32], %67 {strides = array<i32>} : memref<1x4x64x128xf32, #tpu.memory_space<vmem>>, vector<1x1x64x128xf32>,
    return
  }
  func.func @transform_0(%arg0: i32, %arg1: i32) -> (i32, i32, i32) {
    %c0_i32 = arith.constant 0 : i32
    %c0_i32_0 = arith.constant 0 : i32
    return %arg0, %arg1, %c0_i32 : i32, i32, i32
  }
  func.func @transform_1(%arg0: i32, %arg1: i32) -> (i32, i32, i32) {
    %c0_i32 = arith.constant 0 : i32
    %c0_i32_0 = arith.constant 0 : i32
    %c0_i32_1 = arith.constant 0 : i32
    return %arg0, %c0_i32, %c0_i32_0 : i32, i32, i32
  }
  func.func @transform_2(%arg0: i32, %arg1: i32) -> (i32, i32, i32) {
    %c0_i32 = arith.constant 0 : i32
    %c0_i32_0 = arith.constant 0 : i32
    %c0_i32_1 = arith.constant 0 : i32
    return %arg0, %c0_i32, %c0_i32_0 : i32, i32, i32
  }
  func.func @transform_3(%arg0: i32, %arg1: i32) -> (i32, i32, i32) {
    %c0_i32 = arith.constant 0 : i32
    %c0_i32_0 = arith.constant 0 : i32
    return %arg0, %arg1, %c0_i32 : i32, i32, i32
  }
  func.func @transform_4(%arg0: i32, %arg1: i32) -> (i32, i32, i32) {
    %c0_i32 = arith.constant 0 : i32
    %c0_i32_0 = arith.constant 0 : i32
    return %arg0, %arg1, %c0_i32 : i32, i32, i32
  }
  func.func @transform_5(%arg0: i32, %arg1: i32) -> (i32, i32, i32) {
    %c0_i32 = arith.constant 0 : i32
    %c0_i32_0 = arith.constant 0 : i32
    %c0_i32_1 = arith.constant 0 : i32
    return %arg0, %c0_i32, %c0_i32_0 : i32, i32, i32
  }
  func.func @transform_6(%arg0: i32, %arg1: i32) -> (i32, i32, i32, i32) {
    %c0_i32 = arith.constant 0 : i32
    %c0_i32_0 = arith.constant 0 : i32
    %c0_i32_1 = arith.constant 0 : i32
    return %arg0, %c0_i32, %arg1, %c0_i32_0 : i32, i32, i32, i32
  }
}

</mosaic_0001>

<llo_original>
// kernel: tpu_custom_call.1
$region0: #{tpu_custom_call.1}
  #allocation0 [shape = 'u32[]', space=smem, size = 0x4, offset = 0x4, fixed_abs, tag = 'smem constant byte address 0x4 - core index']
  #allocation1 [shape = 'u32[72,128]{1,0:T(1,128)}', space=vmem, size = 0x9000, scoped, tag = 'internal scratch']
  #allocation4 [shape = 's32[]', space=sflag, size = 0x4, offset = 0, fixed_abs, tag = 'sflag constant byte address 0x0 - dummy sync flag']
  %s0 = inlined_call_operand.vmem [shape: f32[2,128,16], index: 0, kind: input, shape index: {}]
  %s1 = inlined_call_operand.vmem [shape: f32[2,16,128], index: 1, kind: input, shape index: {}]
  %s2 = inlined_call_operand.vmem [shape: f32[2,4,128], index: 2, kind: input, shape index: {}]
  %s3 = inlined_call_operand.vmem [shape: f32[2,128,4], index: 3, kind: input, shape index: {}]
  %s4 = inlined_call_operand.vmem [shape: f32[2,128,1], index: 4, kind: input, shape index: {}]
  %s5 = inlined_call_operand.vmem [shape: f32[2,1,128], index: 5, kind: input, shape index: {}]
  %s6 = inlined_call_operand.hbm [shape: f32[2,4,128,128], index: 6, kind: output, shape index: {}]
  %s7 = sld [smem:[#allocation0]]
  $region57: #{tpu_custom_call.1} parent=0
    _
  %s9 = ssub.s32 1, %s7
  %s10 = scalar_select 0, %s9, %s7
  $region1: #{tpu_custom_call.1} parent=0
    #allocation2 [shape = 'u8[262144]{0}', space=vmem, size = 0x40000, scoped, tag = 'output window, operand 0']
    #allocation3 [shape = 's32[2]{0}', space=sflag, size = 0x8, scoped, tag = 'scoped memory for tpu_custom_call.1']
    %11 = vsyncpa [#allocation3], 0
    %s12 = scalar_lea.sflag [#allocation3], 1
    %13 = vsyncpa %s12, 0
    loop: start=0, step=1, limit=6
    $region2: #{tpu_custom_call.1} parent=1 // loop_pre_header
      _
    $region3: #{tpu_custom_call.1} parent=1 // loop_header
      %s15 = sphi 0, %s19
      %p16 = scmp.ge.s32.totalorder %s15, 6
      %s22 = sphi 0, %s34
      %s23 = sphi 0, %s30
      %s24 = sphi 0, %s22
      %s25 = sphi 0, %s23
      %s26 = sphi 0, %s24
      %s27 = sphi 0, %s25
      %s39 = sphi 0, %s41
      %s42 = sphi 0, %s39
      %s43 = sphi 0, %s42
      %s59 = sphi 0, %s43
      %s65 = sphi 0, %s67
      %s68 = sphi 0, %s65
      %s69 = sphi 0, %s68
      %s85 = sphi 0, %s69
      %s91 = sphi 0, %s93
      %s94 = sphi 0, %s91
      %s95 = sphi 0, %s94
      %s111 = sphi 0, %s95
      %s119 = sphi 0, %s121
      %s122 = sphi 0, %s119
      %s123 = sphi 0, %s122
      %s139 = sphi 0, %s123
      %s147 = sphi 0, %s149
      %s150 = sphi 0, %s147
      %s151 = sphi 0, %s150
      %s167 = sphi 0, %s151
      %s173 = sphi 0, %s175
      %s176 = sphi 0, %s173
      %s177 = sphi 0, %s176
      %s193 = sphi 0, %s177
      %s201 = sphi 0, %s203
      %s204 = sphi 0, %s201
      %s205 = sphi 0, %s204
      %s221 = sphi 0, %s205
    $region4: #{tpu_custom_call.1} parent=1 // loop_header_branch
      %18 = sbr.rel (%p16) target = $region8
    $region5: #{tpu_custom_call.1} parent=1 // loop_body
      %s20 = ssub.s32 %s15, 1
      %s21 = ssub.s32 %s15, 2
      %s28 = sadd.s32 1, %s23
      %p29 = scmp.ge.s32.totalorder %s28, 2
      %s30 = scalar_select %p29, 0, %s28
      %s31 = sadd.s32 1, %s22
      %s32 = scalar_select %p29, %s31, %s22
      %p33 = scmp.ge.s32.totalorder %s32, 2
      %s34 = scalar_select %p33, 0, %s32
      %s35 = ssub.s32 %s22, %s34
      %s36 = ssub.s32 %s23, %s30
      %s37 = sor.u32 %s35, %s36
      %p38 = scmp.eq.s32.totalorder %s37, 0
      %s40 = sadd.s32 %s39, 1
      %s41 = scalar_select %p38, %s39, %s40
      %p44 = pneg %p38
      %p45 = scmp.eq.s32.totalorder %s15, 3
      %p46 = por %p44, %p45
      %p47 = scmp.ne.s32.totalorder %s39, %s42
      %p48 = scmp.eq.s32.totalorder %s15, 0
      %p49 = por %p47, %p48
      %p50 = scmp.ne.s32.totalorder %s39, %s42
      %p51 = scmp.eq.s32.totalorder %s20, 3
      %p52 = por %p50, %p51
      %p53 = scmp.ne.s32.totalorder %s42, %s43
      %p54 = scmp.eq.s32.totalorder %s20, 0
      %p55 = por %p53, %p54
      %p56 = scmp.ne.s32.totalorder %s42, %s43
      %p57 = scmp.eq.s32.totalorder %s21, 3
      %p58 = por %p56, %p57
      %p60 = scmp.ne.s32.totalorder %s43, %s59
      %p61 = scmp.eq.s32.totalorder %s21, 0
      %p62 = por %p60, %p61
      %s63 = ssub.s32 %s22, %s34
      %p64 = scmp.eq.s32.totalorder %s63, 0
      %s66 = sadd.s32 %s65, 1
      %s67 = scalar_select %p64, %s65, %s66
      %p70 = pneg %p64
      %p71 = scmp.eq.s32.totalorder %s15, 3
      %p72 = por %p70, %p71
      %p73 = scmp.ne.s32.totalorder %s65, %s68
      %p74 = scmp.eq.s32.totalorder %s15, 0
      %p75 = por %p73, %p74
      %p76 = scmp.ne.s32.totalorder %s65, %s68
      %p77 = scmp.eq.s32.totalorder %s20, 3
      %p78 = por %p76, %p77
      %p79 = scmp.ne.s32.totalorder %s68, %s69
      %p80 = scmp.eq.s32.totalorder %s20, 0
      %p81 = por %p79, %p80
      %p82 = scmp.ne.s32.totalorder %s68, %s69
      %p83 = scmp.eq.s32.totalorder %s21, 3
      %p84 = por %p82, %p83
      %p86 = scmp.ne.s32.totalorder %s69, %s85
      %p87 = scmp.eq.s32.totalorder %s21, 0
      %p88 = por %p86, %p87
      %s89 = ssub.s32 %s22, %s34
      %p90 = scmp.eq.s32.totalorder %s89, 0
      %s92 = sadd.s32 %s91, 1
      %s93 = scalar_select %p90, %s91, %s92
      %p96 = pneg %p90
      %p97 = scmp.eq.s32.totalorder %s15, 3
      %p98 = por %p96, %p97
      %p99 = scmp.ne.s32.totalorder %s91, %s94
      %p100 = scmp.eq.s32.totalorder %s15, 0
      %p101 = por %p99, %p100
      %p102 = scmp.ne.s32.totalorder %s91, %s94
      %p103 = scmp.eq.s32.totalorder %s20, 3
      %p104 = por %p102, %p103
      %p105 = scmp.ne.s32.totalorder %s94, %s95
      %p106 = scmp.eq.s32.totalorder %s20, 0
      %p107 = por %p105, %p106
      %p108 = scmp.ne.s32.totalorder %s94, %s95
      %p109 = scmp.eq.s32.totalorder %s21, 3
      %p110 = por %p108, %p109
      %p112 = scmp.ne.s32.totalorder %s95, %s111
      %p113 = scmp.eq.s32.totalorder %s21, 0
      %p114 = por %p112, %p113
      %s115 = ssub.s32 %s22, %s34
      %s116 = ssub.s32 %s23, %s30
      %s117 = sor.u32 %s115, %s116
      %p118 = scmp.eq.s32.totalorder %s117, 0
      %s120 = sadd.s32 %s119, 1
      %s121 = scalar_select %p118, %s119, %s120
      %p124 = pneg %p118
      %p125 = scmp.eq.s32.totalorder %s15, 3
      %p126 = por %p124, %p125
      %p127 = scmp.ne.s32.totalorder %s119, %s122
      %p128 = scmp.eq.s32.totalorder %s15, 0
      %p129 = por %p127, %p128
      %p130 = scmp.ne.s32.totalorder %s119, %s122
      %p131 = scmp.eq.s32.totalorder %s20, 3
      %p132 = por %p130, %p131
      %p133 = scmp.ne.s32.totalorder %s122, %s123
      %p134 = scmp.eq.s32.totalorder %s20, 0
      %p135 = por %p133, %p134
      %p136 = scmp.ne.s32.totalorder %s122, %s123
      %p137 = scmp.eq.s32.totalorder %s21, 3
      %p138 = por %p136, %p137
      %p140 = scmp.ne.s32.totalorder %s123, %s139
      %p141 = scmp.eq.s32.totalorder %s21, 0
      %p142 = por %p140, %p141
      %s143 = ssub.s32 %s22, %s34
      %s144 = ssub.s32 %s23, %s30
      %s145 = sor.u32 %s143, %s144
      %p146 = scmp.eq.s32.totalorder %s145, 0
      %s148 = sadd.s32 %s147, 1
      %s149 = scalar_select %p146, %s147, %s148
      %p152 = pneg %p146
      %p153 = scmp.eq.s32.totalorder %s15, 3
      %p154 = por %p152, %p153
      %p155 = scmp.ne.s32.totalorder %s147, %s150
      %p156 = scmp.eq.s32.totalorder %s15, 0
      %p157 = por %p155, %p156
      %p158 = scmp.ne.s32.totalorder %s147, %s150
      %p159 = scmp.eq.s32.totalorder %s20, 3
      %p160 = por %p158, %p159
      %p161 = scmp.ne.s32.totalorder %s150, %s151
      %p162 = scmp.eq.s32.totalorder %s20, 0
      %p163 = por %p161, %p162
      %p164 = scmp.ne.s32.totalorder %s150, %s151
      %p165 = scmp.eq.s32.totalorder %s21, 3
      %p166 = por %p164, %p165
      %p168 = scmp.ne.s32.totalorder %s151, %s167
      %p169 = scmp.eq.s32.totalorder %s21, 0
      %p170 = por %p168, %p169
      %s171 = ssub.s32 %s22, %s34
      %p172 = scmp.eq.s32.totalorder %s171, 0
      %s174 = sadd.s32 %s173, 1
      %s175 = scalar_select %p172, %s173, %s174
      %p178 = pneg %p172
      %p179 = scmp.eq.s32.totalorder %s15, 3
      %p180 = por %p178, %p179
      %p181 = scmp.ne.s32.totalorder %s173, %s176
      %p182 = scmp.eq.s32.totalorder %s15, 0
      %p183 = por %p181, %p182
      %p184 = scmp.ne.s32.totalorder %s173, %s176
      %p185 = scmp.eq.s32.totalorder %s20, 3
      %p186 = por %p184, %p185
      %p187 = scmp.ne.s32.totalorder %s176, %s177
      %p188 = scmp.eq.s32.totalorder %s20, 0
      %p189 = por %p187, %p188
      %p190 = scmp.ne.s32.totalorder %s176, %s177
      %p191 = scmp.eq.s32.totalorder %s21, 3
      %p192 = por %p190, %p191
      %p194 = scmp.ne.s32.totalorder %s177, %s193
      %p195 = scmp.eq.s32.totalorder %s21, 0
      %p196 = por %p194, %p195
      %s197 = ssub.s32 %s22, %s34
      %s198 = ssub.s32 %s23, %s30
      %s199 = sor.u32 %s197, %s198
      %p200 = scmp.eq.s32.totalorder %s199, 0
      %s202 = sadd.s32 %s201, 1
      %s203 = scalar_select %p200, %s201, %s202
      %p206 = pneg %p200
      %p207 = scmp.eq.s32.totalorder %s15, 3
      %p208 = por %p206, %p207
      %p209 = scmp.ne.s32.totalorder %s201, %s204
      %p210 = scmp.eq.s32.totalorder %s15, 0
      %p211 = por %p209, %p210
      %p212 = scmp.ne.s32.totalorder %s201, %s204
      %p213 = scmp.eq.s32.totalorder %s20, 3
      %p214 = por %p212, %p213
      %p215 = scmp.ne.s32.totalorder %s204, %s205
      %p216 = scmp.eq.s32.totalorder %s20, 0
      %p217 = por %p215, %p216
      %p218 = scmp.ne.s32.totalorder %s204, %s205
      %p219 = scmp.eq.s32.totalorder %s21, 3
      %p220 = por %p218, %p219
      %p222 = scmp.ne.s32.totalorder %s205, %s221
      %p223 = scmp.eq.s32.totalorder %s21, 0
      %p224 = por %p222, %p223
      %p225 = scmp.le.s32.totalorder 1, %s15
      %p226 = scmp.lt.s32.totalorder %s15, 5
      %p227 = pnand %p225, %p226
      %p228 = pneg %p227
      // Predicated region
      $region9: #{tpu_custom_call.1} parent=5 // pred_check
        _
      $region10: #{tpu_custom_call.1} parent=5 // pred_check_branch
        %230 = sbr.rel (%p227) target = $region12
      $region11: #{tpu_custom_call.1} parent=5 // pred_region
        %s231 = ssub.s32 %s15, 1
      $region12: #{tpu_custom_call.1} parent=5 // pred_fallthru
        _
      %p232 = scmp.lt.s32.totalorder %s15, 4
      // Predicated region
      $region13: #{tpu_custom_call.1} parent=5 // pred_check
        %p233 = pneg %p232
      $region14: #{tpu_custom_call.1} parent=5 // pred_check_branch
        %235 = sbr.rel (%p233) target = $region16
      $region15: #{tpu_custom_call.1} parent=5 // pred_region
        // Predicated region
        $region17: #{tpu_custom_call.1} parent=15 // pred_check
          %p236 = pneg %p49
        $region18: #{tpu_custom_call.1} parent=15 // pred_check_branch
          %238 = sbr.rel (%p236) target = $region20
        $region19: #{tpu_custom_call.1} parent=15 // pred_region
          %s239 = smul.u32 8, %s23
          %p240 = scmp.lt.s32.totalorder %s22, 1
          %s241 = scalar_select %p240, %s22, 1
          %p242 = scmp.lt.s32.totalorder %s239, 15
          %s243 = scalar_select %p242, %s239, 15
          %s244 = smul.addr %s241, 16
          %s245 = sadd.s32 %s243, %s244
          %s246 = smul.addr %s245, 8
          %s247 = scalar_lea.vmem %s0, %s246
          %s248 = smul.u32 8, %s23
        $region20: #{tpu_custom_call.1} parent=15 // pred_fallthru
          _
        // Predicated region
        $region21: #{tpu_custom_call.1} parent=15 // pred_check
          %p249 = pneg %p75
        $region22: #{tpu_custom_call.1} parent=15 // pred_check_branch
          %251 = sbr.rel (%p249) target = $region24
        $region23: #{tpu_custom_call.1} parent=15 // pred_region
          %p252 = scmp.lt.s32.totalorder %s22, 1
          %s253 = scalar_select %p252, %s22, 1
          %s254 = smul.addr %s253, 2
          %s255 = smul.addr %s254, 8
          %s256 = scalar_lea.vmem %s1, %s255
        $region24: #{tpu_custom_call.1} parent=15 // pred_fallthru
          _
        // Predicated region
        $region25: #{tpu_custom_call.1} parent=15 // pred_check
          %p257 = pneg %p101
        $region26: #{tpu_custom_call.1} parent=15 // pred_check_branch
          %259 = sbr.rel (%p257) target = $region28
        $region27: #{tpu_custom_call.1} parent=15 // pred_region
          %p260 = scmp.lt.s32.totalorder %s22, 1
          %s261 = scalar_select %p260, %s22, 1
          %s262 = smul.addr %s261, 4
          %s263 = scalar_lea.vmem %s2, %s262
        $region28: #{tpu_custom_call.1} parent=15 // pred_fallthru
          _
        // Predicated region
        $region29: #{tpu_custom_call.1} parent=15 // pred_check
          %p264 = pneg %p129
        $region30: #{tpu_custom_call.1} parent=15 // pred_check_branch
          %266 = sbr.rel (%p264) target = $region32
        $region31: #{tpu_custom_call.1} parent=15 // pred_region
          %s267 = smul.u32 8, %s23
          %p268 = scmp.lt.s32.totalorder %s22, 1
          %s269 = scalar_select %p268, %s22, 1
          %p270 = scmp.lt.s32.totalorder %s267, 15
          %s271 = scalar_select %p270, %s267, 15
          %s272 = smul.addr %s269, 16
          %s273 = sadd.s32 %s271, %s272
          %s274 = smul.addr %s273, 8
          %s275 = scalar_lea.vmem %s3, %s274
          %s276 = smul.u32 8, %s23
        $region32: #{tpu_custom_call.1} parent=15 // pred_fallthru
          _
        // Predicated region
        $region33: #{tpu_custom_call.1} parent=15 // pred_check
          %p277 = pneg %p157
        $region34: #{tpu_custom_call.1} parent=15 // pred_check_branch
          %279 = sbr.rel (%p277) target = $region36
        $region35: #{tpu_custom_call.1} parent=15 // pred_region
          %s280 = smul.u32 8, %s23
          %p281 = scmp.lt.s32.totalorder %s22, 1
          %s282 = scalar_select %p281, %s22, 1
          %p283 = scmp.lt.s32.totalorder %s280, 15
          %s284 = scalar_select %p283, %s280, 15
          %s285 = smul.addr %s282, 16
          %s286 = sadd.s32 %s284, %s285
          %s287 = smul.addr %s286, 8
          %s288 = scalar_lea.vmem %s4, %s287
          %s289 = smul.u32 8, %s23
        $region36: #{tpu_custom_call.1} parent=15 // pred_fallthru
          _
        // Predicated region
        $region37: #{tpu_custom_call.1} parent=15 // pred_check
          %p290 = pneg %p183
        $region38: #{tpu_custom_call.1} parent=15 // pred_check_branch
          %292 = sbr.rel (%p290) target = $region40
        $region39: #{tpu_custom_call.1} parent=15 // pred_region
          %p293 = scmp.lt.s32.totalorder %s22, 1
          %s294 = scalar_select %p293, %s22, 1
          %s295 = scalar_lea.vmem %s5, %s294
        $region40: #{tpu_custom_call.1} parent=15 // pred_fallthru
          _
      $region16: #{tpu_custom_call.1} parent=5 // pred_fallthru
        _
      %p296 = scmp.le.s32.totalorder 1, %s15
      %p297 = scmp.lt.s32.totalorder %s15, 5
      %p298 = pnand %p296, %p297
      %p299 = pneg %p298
      // Predicated region
      $region41: #{tpu_custom_call.1} parent=5 // pred_check
        _
      $region42: #{tpu_custom_call.1} parent=5 // pred_check_branch
        %301 = sbr.rel (%p298) target = $region44
      $region43: #{tpu_custom_call.1} parent=5 // pred_region
        %s302 = ssub.s32 %s15, 1
        %s303 = smul.u32 8, %s25
        %p304 = scmp.lt.s32.totalorder %s24, 1
        %s305 = scalar_select %p304, %s24, 1
        %p306 = scmp.lt.s32.totalorder %s303, 15
        %s307 = scalar_select %p306, %s303, 15
        %s308 = smul.addr %s305, 16
        %s309 = sadd.s32 %s307, %s308
        %s310 = smul.addr %s309, 8
        %s311 = scalar_lea.vmem %s0, %s310
        %p312 = pneg %p55
        %p313 = pneg %p52
        %p314 = scmp.lt.s32.totalorder %s24, 1
        %s315 = scalar_select %p314, %s24, 1
        %s316 = smul.addr %s315, 2
        %s317 = smul.addr %s316, 8
        %s318 = scalar_lea.vmem %s1, %s317
        %p319 = pneg %p81
        %p320 = pneg %p78
        %p321 = scmp.lt.s32.totalorder %s24, 1
        %s322 = scalar_select %p321, %s24, 1
        %s323 = smul.addr %s322, 4
        %s324 = scalar_lea.vmem %s2, %s323
        %p325 = pneg %p107
        %p326 = pneg %p104
        %s327 = smul.u32 8, %s25
        %p328 = scmp.lt.s32.totalorder %s24, 1
        %s329 = scalar_select %p328, %s24, 1
        %p330 = scmp.lt.s32.totalorder %s327, 15
        %s331 = scalar_select %p330, %s327, 15
        %s332 = smul.addr %s329, 16
        %s333 = sadd.s32 %s331, %s332
        %s334 = smul.addr %s333, 8
        %s335 = scalar_lea.vmem %s3, %s334
        %p336 = pneg %p135
        %p337 = pneg %p132
        %s338 = smul.u32 8, %s25
        %p339 = scmp.lt.s32.totalorder %s24, 1
        %s340 = scalar_select %p339, %s24, 1
        %p341 = scmp.lt.s32.totalorder %s338, 15
        %s342 = scalar_select %p341, %s338, 15
        %s343 = smul.addr %s340, 16
        %s344 = sadd.s32 %s342, %s343
        %s345 = smul.addr %s344, 8
        %s346 = scalar_lea.vmem %s4, %s345
        %p347 = pneg %p163
        %p348 = pneg %p160
        %p349 = scmp.lt.s32.totalorder %s24, 1
        %s350 = scalar_select %p349, %s24, 1
        %s351 = scalar_lea.vmem %s5, %s350
        %p352 = pneg %p189
        %p353 = pneg %p186
        %p354 = pneg %p217
        %p355 = pneg %p214
        %s356 = sand.u32 %s204, 1
        %s357 = scalar_lea.sflag [#allocation3], %s356
        %s358 = sand.u32 %s204, 1
        %s359 = smul.addr %s358, 256
        %s360 = scalar_lea.vmem [#allocation2], %s359
        %s361 = smul.u32 8, %s25
        %p362 = scmp.lt.s32.totalorder %s24, 1
        %s363 = scalar_select %p362, %s24, 1
        %p364 = scmp.lt.s32.totalorder %s361, 15
        %s365 = scalar_select %p364, %s361, 15
        %s366 = smul.addr %s363, 16
        %s367 = sadd.s32 %s365, %s366
        %s368 = smul.addr %s367, 8
        %s369 = scalar_lea.vmem %s0, %s368
        %s370 = smul.u32 8, %s25
        %p371 = scmp.lt.s32.totalorder %s24, 1
        %s372 = scalar_select %p371, %s24, 1
        %s373 = smul.addr %s372, 2
        %s374 = smul.addr %s373, 8
        %s375 = scalar_lea.vmem %s1, %s374
        %p376 = scmp.lt.s32.totalorder %s24, 1
        %s377 = scalar_select %p376, %s24, 1
        %s378 = smul.addr %s377, 4
        %s379 = scalar_lea.vmem %s2, %s378
        %s380 = smul.u32 8, %s25
        %p381 = scmp.lt.s32.totalorder %s24, 1
        %s382 = scalar_select %p381, %s24, 1
        %p383 = scmp.lt.s32.totalorder %s380, 15
        %s384 = scalar_select %p383, %s380, 15
        %s385 = smul.addr %s382, 16
        %s386 = sadd.s32 %s384, %s385
        %s387 = smul.addr %s386, 8
        %s388 = scalar_lea.vmem %s3, %s387
        %s389 = smul.u32 8, %s25
        %s390 = smul.u32 8, %s25
        %p391 = scmp.lt.s32.totalorder %s24, 1
        %s392 = scalar_select %p391, %s24, 1
        %p393 = scmp.lt.s32.totalorder %s390, 15
        %s394 = scalar_select %p393, %s390, 15
        %s395 = smul.addr %s392, 16
        %s396 = sadd.s32 %s394, %s395
        %s397 = smul.addr %s396, 8
        %s398 = scalar_lea.vmem %s4, %s397
        %s399 = smul.u32 8, %s25
        %p400 = scmp.lt.s32.totalorder %s24, 1
        %s401 = scalar_select %p400, %s24, 1
        %s402 = scalar_lea.vmem %s5, %s401
        %s403 = smul.u32 8, %s25
        %s404 = smul.u32 %s25, 64
        %v405 = vld [vmem:[%s369] sm:$0xff]
        %v406 = vld [vmem:[%s369 + $0x8] sm:$0xff]
        %v407 = vld [vmem:[%s369 + $0x10] sm:$0xff]
        %v408 = vld [vmem:[%s369 + $0x18] sm:$0xff]
        %v409 = vld [vmem:[%s369 + $0x20] sm:$0xff]
        %v410 = vld [vmem:[%s369 + $0x28] sm:$0xff]
        %v411 = vld [vmem:[%s369 + $0x30] sm:$0xff]
        %v412 = vld [vmem:[%s369 + $0x38] sm:$0xff]
        %v413 = vld [vmem:[%s375] sm:$0xff]
        %v414 = vld [vmem:[%s375 + $0x8] sm:$0xff]
        %vm415 = vcmask 130048
        %v417 = vsel %vm415, %v405, 0
        %v420 = vsel %vm415, %v406, 0
        %v423 = vsel %vm415, %v407, 0
        %v426 = vsel %vm415, %v408, 0
        %v429 = vsel %vm415, %v409, 0
        %v432 = vsel %vm415, %v410, 0
        %v435 = vsel %vm415, %v411, 0
        %v438 = vsel %vm415, %v412, 0
        %440 = vmatpush.msra.mxu0 0.0
        %441 = vmatpush.msra.mxu0 0.0
        %442 = vmatpush.msra.mxu0 0.0
        %443 = vmatpush.msra.mxu0 0.0
        %444 = vmatpush.msra.mxu0 0.0
        %445 = vmatpush.msra.mxu0 0.0
        %446 = vmatpush.msra.mxu0 0.0
        %447 = vmatpush.msra.mxu0 0.0
        %448 = vmatpush.msra.mxu0 0.0
        %449 = vmatpush.msra.mxu0 0.0
        %450 = vmatpush.msra.mxu0 0.0
        %451 = vmatpush.msra.mxu0 0.0
        %452 = vmatpush.msra.mxu0 0.0
        %453 = vmatpush.msra.mxu0 0.0
        %454 = vmatpush.msra.mxu0 %v414
        %455 = vmatpush.msra.mxu0 %v413
        %456 = vmatmul.f32.gmra.mxu0 %v417
        %v457 = vpop.f32.mrf.mxu0
        %v458 = vadd.f32 0.0, %v457
        %459 = vmatmul.f32.gmra.mxu0 %v420
        %v460 = vpop.f32.mrf.mxu0
        %v461 = vadd.f32 0.0, %v460
        %462 = vmatmul.f32.gmra.mxu0 %v423
        %v463 = vpop.f32.mrf.mxu0
        %v464 = vadd.f32 0.0, %v463
        %465 = vmatmul.f32.gmra.mxu0 %v426
        %v466 = vpop.f32.mrf.mxu0
        %v467 = vadd.f32 0.0, %v466
        %468 = vmatmul.f32.gmra.mxu0 %v429
        %v469 = vpop.f32.mrf.mxu0
        %v470 = vadd.f32 0.0, %v469
        %471 = vmatmul.f32.gmra.mxu0 %v432
        %v472 = vpop.f32.mrf.mxu0
        %v473 = vadd.f32 0.0, %v472
        %474 = vmatmul.f32.gmra.mxu0 %v435
        %v475 = vpop.f32.mrf.mxu0
        %v476 = vadd.f32 0.0, %v475
        %477 = vmatmul.f32.gmra.mxu0 %v438
        %v478 = vpop.f32.mrf.mxu0
        %v479 = vadd.f32 0.0, %v478
        %480 = vdwg.mxu0
        %v481 = vlaneseq
        %v482 = vshrl.u32 %v481, 7
        %v483 = vadd.s32 %v482, 8
        %v484 = vadd.s32 %v482, 16
        %v485 = vadd.s32 %v482, 24
        %v486 = vadd.s32 %v482, 32
        %v487 = vadd.s32 %v482, 40
        %v488 = vadd.s32 %v482, 48
        %v489 = vadd.s32 %v482, 56
        %v490 = vstv %s404
        %v491 = vadd.s32 %v482, %v490
        %v492 = vadd.s32 %v483, %v490
        %v493 = vadd.s32 %v484, %v490
        %v494 = vadd.s32 %v485, %v490
        %v495 = vadd.s32 %v486, %v490
        %v496 = vadd.s32 %v487, %v490
        %v497 = vadd.s32 %v488, %v490
        %v498 = vadd.s32 %v489, %v490
        %v499 = vlaneseq
        %v500 = vand.u32 %v499, 127
        %v501 = vld [vmem:[%s398] sm:$0xff]
        %v502 = vld [vmem:[%s398 + $0x8] sm:$0xff]
        %v503 = vld [vmem:[%s398 + $0x10] sm:$0xff]
        %v504 = vld [vmem:[%s398 + $0x18] sm:$0xff]
        %v505 = vld [vmem:[%s398 + $0x20] sm:$0xff]
        %v506 = vld [vmem:[%s398 + $0x28] sm:$0xff]
        %v507 = vld [vmem:[%s398 + $0x30] sm:$0xff]
        %v508 = vld [vmem:[%s398 + $0x38] sm:$0xff]
        %v509 = vld [vmem:[%s402] sm:$0x1]
        %511 = vset.pattern.permute.xlu0 0
        %512 = vperm.xlu0 %511, %v501
        %v513 = vpop.permute.xlu0 %512
        %516 = vset.pattern.permute.xlu0 0
        %517 = vperm.xlu0 %516, %v502
        %v518 = vpop.permute.xlu0 %517
        %521 = vset.pattern.permute.xlu0 0
        %522 = vperm.xlu0 %521, %v503
        %v523 = vpop.permute.xlu0 %522
        %526 = vset.pattern.permute.xlu0 0
        %527 = vperm.xlu0 %526, %v504
        %v528 = vpop.permute.xlu0 %527
        %531 = vset.pattern.permute.xlu0 0
        %532 = vperm.xlu0 %531, %v505
        %v533 = vpop.permute.xlu0 %532
        %536 = vset.pattern.permute.xlu0 0
        %537 = vperm.xlu0 %536, %v506
        %v538 = vpop.permute.xlu0 %537
        %541 = vset.pattern.permute.xlu0 0
        %542 = vperm.xlu0 %541, %v507
        %v543 = vpop.permute.xlu0 %542
        %546 = vset.pattern.permute.xlu0 0
        %547 = vperm.xlu0 %546, %v508
        %v548 = vpop.permute.xlu0 %547
        %v551 = vperm.slane %v509, 0
        %v553 = vmul.f32 %v513, %v551
        %v554 = vmul.f32 %v518, %v551
        %v555 = vmul.f32 %v523, %v551
        %v556 = vmul.f32 %v528, %v551
        %v557 = vmul.f32 %v533, %v551
        %v558 = vmul.f32 %v538, %v551
        %v559 = vmul.f32 %v543, %v551
        %v560 = vmul.f32 %v548, %v551
        %v561 = vsub.f32 1.0, %v553
        %v562 = vsub.f32 1.0, %v554
        %v563 = vsub.f32 1.0, %v555
        %v564 = vsub.f32 1.0, %v556
        %v565 = vsub.f32 1.0, %v557
        %v566 = vsub.f32 1.0, %v558
        %v567 = vsub.f32 1.0, %v559
        %v568 = vsub.f32 1.0, %v560
        %v569 = vmul.f32 %v561, 1e+13
        %v570 = vmul.f32 %v562, 1e+13
        %v571 = vmul.f32 %v563, 1e+13
        %v572 = vmul.f32 %v564, 1e+13
        %v573 = vmul.f32 %v565, 1e+13
        %v574 = vmul.f32 %v566, 1e+13
        %v575 = vmul.f32 %v567, 1e+13
        %v576 = vmul.f32 %v568, 1e+13
        %vm577 = vcmp.gt.s32.totalorder %v491, %v500
        %vm578 = vcmp.gt.s32.totalorder %v492, %v500
        %vm579 = vcmp.gt.s32.totalorder %v493, %v500
        %vm580 = vcmp.gt.s32.totalorder %v494, %v500
        %vm581 = vcmp.gt.s32.totalorder %v495, %v500
        %vm582 = vcmp.gt.s32.totalorder %v496, %v500
        %vm583 = vcmp.gt.s32.totalorder %v497, %v500
        %vm584 = vcmp.gt.s32.totalorder %v498, %v500
        %v585 = vadd.f32 %v569, 1e+13
        %v586 = vadd.f32 %v570, 1e+13
        %v587 = vadd.f32 %v571, 1e+13
        %v588 = vadd.f32 %v572, 1e+13
        %v589 = vadd.f32 %v573, 1e+13
        %v590 = vadd.f32 %v574, 1e+13
        %v591 = vadd.f32 %v575, 1e+13
        %v592 = vadd.f32 %v576, 1e+13
        %v593 = vsel %vm577, %v585, %v569
        %v594 = vsel %vm578, %v586, %v570
        %v595 = vsel %vm579, %v587, %v571
        %v596 = vsel %vm580, %v588, %v572
        %v597 = vsel %vm581, %v589, %v573
        %v598 = vsel %vm582, %v590, %v574
        %v599 = vsel %vm583, %v591, %v575
        %v600 = vsel %vm584, %v592, %v576
        %v601 = vsub.f32 %v458, %v593
        %v602 = vsub.f32 %v461, %v594
        %v603 = vsub.f32 %v464, %v595
        %v604 = vsub.f32 %v467, %v596
        %v605 = vsub.f32 %v470, %v597
        %v606 = vsub.f32 %v473, %v598
        %v607 = vsub.f32 %v476, %v599
        %v608 = vsub.f32 %v479, %v600
        %v609 = vld [vmem:[%s379] sm:$0xf]
        %v610 = vld [vmem:[%s388] sm:$0xff]
        %v611 = vld [vmem:[%s388 + $0x8] sm:$0xff]
        %v612 = vld [vmem:[%s388 + $0x10] sm:$0xff]
        %v613 = vld [vmem:[%s388 + $0x18] sm:$0xff]
        %v614 = vld [vmem:[%s388 + $0x20] sm:$0xff]
        %v615 = vld [vmem:[%s388 + $0x28] sm:$0xff]
        %v616 = vld [vmem:[%s388 + $0x30] sm:$0xff]
        %v617 = vld [vmem:[%s388 + $0x38] sm:$0xff]
        %v618 = vperm.slane %v609, 0
        %v619 = vadd.f32 %v601, %v618
        %v620 = vadd.f32 %v602, %v618
        %v621 = vadd.f32 %v603, %v618
        %v622 = vadd.f32 %v604, %v618
        %v623 = vadd.f32 %v605, %v618
        %v624 = vadd.f32 %v606, %v618
        %v625 = vadd.f32 %v607, %v618
        %v626 = vadd.f32 %v608, %v618
        %628 = vset.pattern.permute.xlu0 0
        %629 = vperm.xlu0 %628, %v610
        %v630 = vpop.permute.xlu0 %629
        %633 = vset.pattern.permute.xlu0 0
        %634 = vperm.xlu0 %633, %v611
        %v635 = vpop.permute.xlu0 %634
        %638 = vset.pattern.permute.xlu0 0
        %639 = vperm.xlu0 %638, %v612
        %v640 = vpop.permute.xlu0 %639
        %643 = vset.pattern.permute.xlu0 0
        %644 = vperm.xlu0 %643, %v613
        %v645 = vpop.permute.xlu0 %644
        %648 = vset.pattern.permute.xlu0 0
        %649 = vperm.xlu0 %648, %v614
        %v650 = vpop.permute.xlu0 %649
        %653 = vset.pattern.permute.xlu0 0
        %654 = vperm.xlu0 %653, %v615
        %v655 = vpop.permute.xlu0 %654
        %658 = vset.pattern.permute.xlu0 0
        %659 = vperm.xlu0 %658, %v616
        %v660 = vpop.permute.xlu0 %659
        %663 = vset.pattern.permute.xlu0 0
        %664 = vperm.xlu0 %663, %v617
        %v665 = vpop.permute.xlu0 %664
        %v667 = vadd.f32 %v619, %v630
        %v668 = vadd.f32 %v620, %v635
        %v669 = vadd.f32 %v621, %v640
        %v670 = vadd.f32 %v622, %v645
        %v671 = vadd.f32 %v623, %v650
        %v672 = vadd.f32 %v624, %v655
        %v673 = vadd.f32 %v625, %v660
        %v674 = vadd.f32 %v626, %v665
        %675 = vst [vmem:[%s360] sm:$0xff] %v667
        %676 = vst [vmem:[%s360 + $0x8] sm:$0xff] %v668
        %677 = vst [vmem:[%s360 + $0x10] sm:$0xff] %v669
        %678 = vst [vmem:[%s360 + $0x18] sm:$0xff] %v670
        %679 = vst [vmem:[%s360 + $0x20] sm:$0xff] %v671
        %680 = vst [vmem:[%s360 + $0x28] sm:$0xff] %v672
        %681 = vst [vmem:[%s360 + $0x30] sm:$0xff] %v673
        %682 = vst [vmem:[%s360 + $0x38] sm:$0xff] %v674
        %v683 = vperm.slane %v609, 1
        %v684 = vadd.f32 %v601, %v683
        %v685 = vadd.f32 %v602, %v683
        %v686 = vadd.f32 %v603, %v683
        %v687 = vadd.f32 %v604, %v683
        %v688 = vadd.f32 %v605, %v683
        %v689 = vadd.f32 %v606, %v683
        %v690 = vadd.f32 %v607, %v683
        %v691 = vadd.f32 %v608, %v683
        %692 = vset.pattern.permute.xlu0 1
        %693 = vperm.xlu0 %692, %v610
        %v694 = vpop.permute.xlu0 %693
        %696 = vset.pattern.permute.xlu0 1
        %697 = vperm.xlu0 %696, %v611
        %v698 = vpop.permute.xlu0 %697
        %700 = vset.pattern.permute.xlu0 1
        %701 = vperm.xlu0 %700, %v612
        %v702 = vpop.permute.xlu0 %701
        %704 = vset.pattern.permute.xlu0 1
        %705 = vperm.xlu0 %704, %v613
        %v706 = vpop.permute.xlu0 %705
        %708 = vset.pattern.permute.xlu0 1
        %709 = vperm.xlu0 %708, %v614
        %v710 = vpop.permute.xlu0 %709
        %712 = vset.pattern.permute.xlu0 1
        %713 = vperm.xlu0 %712, %v615
        %v714 = vpop.permute.xlu0 %713
        %716 = vset.pattern.permute.xlu0 1
        %717 = vperm.xlu0 %716, %v616
        %v718 = vpop.permute.xlu0 %717
        %720 = vset.pattern.permute.xlu0 1
        %721 = vperm.xlu0 %720, %v617
        %v722 = vpop.permute.xlu0 %721
        %v724 = vadd.f32 %v684, %v694
        %v725 = vadd.f32 %v685, %v698
        %v726 = vadd.f32 %v686, %v702
        %v727 = vadd.f32 %v687, %v706
        %v728 = vadd.f32 %v688, %v710
        %v729 = vadd.f32 %v689, %v714
        %v730 = vadd.f32 %v690, %v718
        %v731 = vadd.f32 %v691, %v722
        %s732 = scalar_lea.vmem %s360, 64 [#allocation2]
        %733 = vst [vmem:[%s732] sm:$0xff] %v724
        %734 = vst [vmem:[%s732 + $0x8] sm:$0xff] %v725
        %735 = vst [vmem:[%s732 + $0x10] sm:$0xff] %v726
        %736 = vst [vmem:[%s732 + $0x18] sm:$0xff] %v727
        %737 = vst [vmem:[%s732 + $0x20] sm:$0xff] %v728
        %738 = vst [vmem:[%s732 + $0x28] sm:$0xff] %v729
        %739 = vst [vmem:[%s732 + $0x30] sm:$0xff] %v730
        %740 = vst [vmem:[%s732 + $0x38] sm:$0xff] %v731
        %v741 = vperm.slane %v609, 2
        %v742 = vadd.f32 %v601, %v741
        %v743 = vadd.f32 %v602, %v741
        %v744 = vadd.f32 %v603, %v741
        %v745 = vadd.f32 %v604, %v741
        %v746 = vadd.f32 %v605, %v741
        %v747 = vadd.f32 %v606, %v741
        %v748 = vadd.f32 %v607, %v741
        %v749 = vadd.f32 %v608, %v741
        %750 = vset.pattern.permute.xlu0 2
        %751 = vperm.xlu0 %750, %v610
        %v752 = vpop.permute.xlu0 %751
        %754 = vset.pattern.permute.xlu0 2
        %755 = vperm.xlu0 %754, %v611
        %v756 = vpop.permute.xlu0 %755
        %758 = vset.pattern.permute.xlu0 2
        %759 = vperm.xlu0 %758, %v612
        %v760 = vpop.permute.xlu0 %759
        %762 = vset.pattern.permute.xlu0 2
        %763 = vperm.xlu0 %762, %v613
        %v764 = vpop.permute.xlu0 %763
        %766 = vset.pattern.permute.xlu0 2
        %767 = vperm.xlu0 %766, %v614
        %v768 = vpop.permute.xlu0 %767
        %770 = vset.pattern.permute.xlu0 2
        %771 = vperm.xlu0 %770, %v615
        %v772 = vpop.permute.xlu0 %771
        %774 = vset.pattern.permute.xlu0 2
        %775 = vperm.xlu0 %774, %v616
        %v776 = vpop.permute.xlu0 %775
        %778 = vset.pattern.permute.xlu0 2
        %779 = vperm.xlu0 %778, %v617
        %v780 = vpop.permute.xlu0 %779
        %v782 = vadd.f32 %v742, %v752
        %v783 = vadd.f32 %v743, %v756
        %v784 = vadd.f32 %v744, %v760
        %v785 = vadd.f32 %v745, %v764
        %v786 = vadd.f32 %v746, %v768
        %v787 = vadd.f32 %v747, %v772
        %v788 = vadd.f32 %v748, %v776
        %v789 = vadd.f32 %v749, %v780
        %s790 = scalar_lea.vmem %s360, 128 [#allocation2]
        %791 = vst [vmem:[%s790] sm:$0xff] %v782
        %792 = vst [vmem:[%s790 + $0x8] sm:$0xff] %v783
        %793 = vst [vmem:[%s790 + $0x10] sm:$0xff] %v784
        %794 = vst [vmem:[%s790 + $0x18] sm:$0xff] %v785
        %795 = vst [vmem:[%s790 + $0x20] sm:$0xff] %v786
        %796 = vst [vmem:[%s790 + $0x28] sm:$0xff] %v787
        %797 = vst [vmem:[%s790 + $0x30] sm:$0xff] %v788
        %798 = vst [vmem:[%s790 + $0x38] sm:$0xff] %v789
        %v799 = vperm.slane %v609, 3
        %v800 = vadd.f32 %v601, %v799
        %v801 = vadd.f32 %v602, %v799
        %v802 = vadd.f32 %v603, %v799
        %v803 = vadd.f32 %v604, %v799
        %v804 = vadd.f32 %v605, %v799
        %v805 = vadd.f32 %v606, %v799
        %v806 = vadd.f32 %v607, %v799
        %v807 = vadd.f32 %v608, %v799
        %808 = vset.pattern.permute.xlu0 3
        %809 = vperm.xlu0 %808, %v610
        %v810 = vpop.permute.xlu0 %809
        %812 = vset.pattern.permute.xlu0 3
        %813 = vperm.xlu0 %812, %v611
        %v814 = vpop.permute.xlu0 %813
        %816 = vset.pattern.permute.xlu0 3
        %817 = vperm.xlu0 %816, %v612
        %v818 = vpop.permute.xlu0 %817
        %820 = vset.pattern.permute.xlu0 3
        %821 = vperm.xlu0 %820, %v613
        %v822 = vpop.permute.xlu0 %821
        %824 = vset.pattern.permute.xlu0 3
        %825 = vperm.xlu0 %824, %v614
        %v826 = vpop.permute.xlu0 %825
        %828 = vset.pattern.permute.xlu0 3
        %829 = vperm.xlu0 %828, %v615
        %v830 = vpop.permute.xlu0 %829
        %832 = vset.pattern.permute.xlu0 3
        %833 = vperm.xlu0 %832, %v616
        %v834 = vpop.permute.xlu0 %833
        %836 = vset.pattern.permute.xlu0 3
        %837 = vperm.xlu0 %836, %v617
        %v838 = vpop.permute.xlu0 %837
        %v840 = vadd.f32 %v800, %v810
        %v841 = vadd.f32 %v801, %v814
        %v842 = vadd.f32 %v802, %v818
        %v843 = vadd.f32 %v803, %v822
        %v844 = vadd.f32 %v804, %v826
        %v845 = vadd.f32 %v805, %v830
        %v846 = vadd.f32 %v806, %v834
        %v847 = vadd.f32 %v807, %v838
        %s848 = scalar_lea.vmem %s360, 192 [#allocation2]
        %849 = vst [vmem:[%s848] sm:$0xff] %v840
        %850 = vst [vmem:[%s848 + $0x8] sm:$0xff] %v841
        %851 = vst [vmem:[%s848 + $0x10] sm:$0xff] %v842
        %852 = vst [vmem:[%s848 + $0x18] sm:$0xff] %v843
        %853 = vst [vmem:[%s848 + $0x20] sm:$0xff] %v844
        %854 = vst [vmem:[%s848 + $0x28] sm:$0xff] %v845
        %855 = vst [vmem:[%s848 + $0x30] sm:$0xff] %v846
        %856 = vst [vmem:[%s848 + $0x38] sm:$0xff] %v847
        %s857 = sand.u32 %s204, 1
        %s858 = scalar_lea.sflag [#allocation3], %s857
        %s859 = sand.u32 %s204, 1
        %s860 = smul.addr %s859, 256
        %s861 = scalar_lea.vmem [#allocation2], %s860
        // Predicated region
        $region45: #{tpu_custom_call.1} parent=43 // pred_check
          %p862 = pneg %p214
        $region46: #{tpu_custom_call.1} parent=43 // pred_check_branch
          %864 = sbr.rel (%p862) target = $region48
        $region47: #{tpu_custom_call.1} parent=43 // pred_region
          #allocation5 [shape = 'u32[6]{0}', space=smem, size = 0x18, scoped, tag = 'DMA stride descriptor']
          %s865 = smul.u32 8, %s25
          %867 = vsyncadd %s858, 0
          %s868 = smul.addr %s24, 64
          %s869 = sadd.s32 %s865, %s868
          %s870 = smul.addr %s869, 8
          %s871 = scalar_lea.hbm %s6, %s870
          %s873 = sshll.u32 1, 14
          %s874 = sxor.u32 4294967295, %s873
          %s877 = sshll.u32 7, 18
          %s878 = sxor.u32 4294967295, %s877
          %s879 = sand.u32 0, %s878
          %s881 = sor.u32 %s879, 0
          %s882 = sshll.u32 %s861, 4
          %s883 = int_to_ptr.vmem [resolvable:$true] %s882
          %s884 = sshll.u32 %s871, 4
          %s885 = int_to_ptr.hbm [resolvable:$true] %s884
          %891 = sst [smem:[#allocation5]] 1024
          %s892 = scalar_lea.smem [#allocation5], 1
          %893 = sst [smem:[%s892]] 2048
          %s894 = scalar_lea.smem [#allocation5], 2
          %895 = sst [smem:[%s894]] 8
          %s896 = scalar_lea.smem [#allocation5], 3
          %897 = sst [smem:[%s896]] 128
          %s898 = scalar_lea.smem [#allocation5], 4
          %899 = sst [smem:[%s898]] 128
          %s900 = scalar_lea.smem [#allocation5], 5
          %901 = sst [smem:[%s900]] 8
          %903 = dma.general %s883, 4096, %s885, %s858, [#allocation4], [#allocation5], %s881, 0
        $region48: #{tpu_custom_call.1} parent=43 // pred_fallthru
          _
      $region44: #{tpu_custom_call.1} parent=5 // pred_fallthru
        _
      %p904 = scmp.le.s32.totalorder 2, %s15
      // Predicated region
      $region49: #{tpu_custom_call.1} parent=5 // pred_check
        %p905 = pneg %p904
      $region50: #{tpu_custom_call.1} parent=5 // pred_check_branch
        %907 = sbr.rel (%p905) target = $region52
      $region51: #{tpu_custom_call.1} parent=5 // pred_region
        %s908 = ssub.s32 %s15, 2
        // Predicated region
        $region53: #{tpu_custom_call.1} parent=51 // pred_check
          %p909 = pneg %p220
        $region54: #{tpu_custom_call.1} parent=51 // pred_check_branch
          %911 = sbr.rel (%p909) target = $region56
        $region55: #{tpu_custom_call.1} parent=51 // pred_region
          %s912 = sand.u32 %s205, 1
          %s913 = scalar_lea.sflag [#allocation3], %s912
          %s914 = sand.u32 %s205, 1
          %s915 = smul.addr %s914, 256
          %s916 = scalar_lea.vmem [#allocation2], %s915
          %918 = dma.done %s913, 4096
        $region56: #{tpu_custom_call.1} parent=51 // pred_fallthru
          _
      $region52: #{tpu_custom_call.1} parent=5 // pred_fallthru
        _
    $region6: #{tpu_custom_call.1} parent=1 // loop_footer
      %s19 = sadd.s32 1, %s15
    $region7: #{tpu_custom_call.1} parent=1 // loop_footer_branch
      %14 = sbr.rel target = $region3
    $region8: #{tpu_custom_call.1} parent=1 // loop_exit
      _
    %919 = vsyncpa [#allocation3], 1
    %s920 = scalar_lea.sflag [#allocation3], 1
    %921 = vsyncpa %s920, 1

</llo_original>
